<compile_context>
chip_gen: v7x
topology: tpu7x:2x2x1
jax: 0.10.0
libtpu: 0.0.40
codegen_flags: <defaults>
</compile_context>

<pallas_src>
import functools

import jax
import jax.numpy as jnp
from jax.experimental import pallas as pl
from jax.experimental.pallas import tpu as pltpu


# ----------------------------------------------------------------------------
# Fused kernel: all MyGAT layers over one block of Bb identical-topology graphs
# treated as a single block-diagonal graph of M = Bb*N nodes (exactly the batched
# graph Batch.from_data_list builds inside MyGAT.forward).
# ----------------------------------------------------------------------------
def _mygat_fused_kernel(*refs, heads, num_layers, negative_slope):
    # refs = (x_ref, adj_ref,
    #         lin_0, att_0, bias_0, ..., lin_{L-1}, att_{L-1}, bias_{L-1},
    #         out_ref, act_ref)
    #   x_ref   : (M, Fin0)      f32   node features of this graph block
    #   adj_ref : (M, M)         bf16  adj[i, j] = 1 iff edge j -> i (block-diag)
    #   lin_l   : (Fin_l, H*C_l) f32 VMEM (lin_src; lin_dst unused on Tensor path)
    #   att_l   : (H, C_l)       f32 SMEM (read as scalars)
    #   bias_l  : (1, H*C_l)     f32 VMEM
    #   out_ref : (M, H*C_last)  f32
    #   act_ref : (M, max_HC)    f32 VMEM scratch for the inter-layer activation
    H = heads
    slope = float(negative_slope)

    x_ref, adj_ref = refs[0], refs[1]
    layer_refs = refs[2:2 + 3 * num_layers]
    out_ref = refs[2 + 3 * num_layers]
    act_ref = refs[3 + 3 * num_layers]

    adj = adj_ref[...].astype(jnp.float32)                 # (M, M), exact 0/1
    M = adj.shape[0]

    for l in range(num_layers):                            # static: few layers
        lin_ref = layer_refs[3 * l]
        att_ref = layer_refs[3 * l + 1]
        bias_ref = layer_refs[3 * l + 2]
        fin, hc = lin_ref.shape
        C = hc // H
        last = (l == num_layers - 1)

        cur = x_ref[...] if l == 0 else act_ref[:, :fin]   # activation stays in VMEM

        # ---- projection on the MXU: bf16 operands, f32 accumulation ----
        z = jnp.dot(cur.astype(jnp.bfloat16), lin_ref[...].astype(jnp.bfloat16),
                    preferred_element_type=jnp.float32)    # (M, H*C)
        # Source-side features with nodes on lanes (one tiny XLU transpose/layer).
        zT = z.T                                           # (H*C, M)
        bias = bias_ref[...]                               # (1, H*C)

        for h in range(H):                                 # static, H = 1..2
            # ---- lane-dense GATv2 logits: C-unrolled 2-D (M, M) ops ----
            # logits[i, j] = sum_c att[h,c] * leaky_relu(z[i, hC+c] + z[j, hC+c])
            logits = jnp.zeros((M, M), jnp.float32)
            for c in range(C):                             # static, C = 4..8
                k = h * C + c
                s = z[:, k:k + 1] + zT[k:k + 1, :]         # (M,1)+(1,M) -> (M, M)
                s = jnp.maximum(s, slope * s)              # leaky-relu, no select
                logits = logits + att_ref[h, c] * s        # scalar from SMEM

            # ---- per-target softmax over incoming edges (single source tile) ----
            # Unmasked row max is still a valid stabilizer; non-edges are zeroed
            # multiplicatively below (no additive -1e30 mask needed).
            m = jnp.max(logits, axis=-1, keepdims=True)    # (M, 1)
            p = jnp.exp(logits - m) * adj                  # exact 0 off-edges
            lsum = jnp.sum(p, axis=-1, keepdims=True)      # (M, 1)
            denom = lsum + (lsum <= 0.0).astype(jnp.float32)   # isolated target -> 0

            # ---- aggregation on the MXU: alpha @ x_j, bf16 in / f32 acc ----
            agg = jnp.dot(p.astype(jnp.bfloat16),
                          z[:, h * C:(h + 1) * C].astype(jnp.bfloat16),
                          preferred_element_type=jnp.float32)  # (M, C)
            out_h = agg * pl.reciprocal(denom, approx=True)    # divide on the EUP
            out_h = out_h + bias[:, h * C:(h + 1) * C]

            if last:
                # final_act=None in MyGAT; per-head static-slice store.
                # (Output stays (M, H*C); H*C is the full last dim so the block is
                # legal — lane-dense relayout left out since compute dominates.)
                out_ref[:, h * C:(h + 1) * C] = out_h.astype(out_ref.dtype)
            else:
                # inter-layer ReLU; activation kept in VMEM scratch (no HBM trip)
                act_ref[:, h * C:(h + 1) * C] = jnp.maximum(out_h, 0.0)


# ----------------------------------------------------------------------------
# Wrappers
# ----------------------------------------------------------------------------
def _pick_graphs_per_block(batch, nodes, max_block_nodes=512, min_blocks=2):
    """Largest divisor Bb of `batch` with Bb*nodes <= max_block_nodes while keeping
    at least `min_blocks` grid steps (v7x megacore + pipelining).  Falls back to the
    largest fitting divisor if `batch` is too small for that."""
    cap = max(1, max_block_nodes // max(nodes, 1))
    cap = min(cap, batch)
    target = min(min_blocks, batch)
    for bb in range(cap, 0, -1):
        if batch % bb == 0 and batch // bb >= target:
            return bb
    for bb in range(cap, 0, -1):
        if batch % bb == 0:
            return bb
    return 1


def mygat_forward(params, x, edge_index, *, heads, negative_slope=0.2,
                  max_block_nodes=512, min_blocks=2):
    """MyGAT.forward: hidden GATv2 layers + ReLU, then final GATv2 layer
    (add_self_loops=False, dropout=0, batch_norm=False, final_act=None), fused
    into a single pallas_call over batch blocks of identical-topology graphs."""
    if x.ndim == 2:
        x = x[None]                                        # x.unsqueeze(0)
    B, N, Fin = x.shape
    src, dst = edge_index[0], edge_index[1]
    adj = jnp.zeros((N, N), jnp.float32).at[dst, src].set(1.0)   # adj[i,j]: edge j->i

    bb = _pick_graphs_per_block(B, N, max_block_nodes, min_blocks)
    M = bb * N
    num_blocks = B // bb
    # Block-diagonal adjacency for a block of bb graphs (the structure
    # Batch.from_data_list builds); bf16 halves the only O(M^2) DMA, 0/1 exact.
    adj_block = jnp.kron(jnp.eye(bb, dtype=jnp.float32), adj).astype(jnp.bfloat16)
    x_flat = x.reshape(B * N, Fin)

    hcs = [lin.shape[1] for (lin, _, _) in params]
    hc_last = hcs[-1]
    scratch_w = max(hcs)

    in_specs = [
        pl.BlockSpec((M, Fin), lambda b: (b, 0)),
        pl.BlockSpec((M, M), lambda b: (0, 0)),            # grid-invariant
    ]
    inputs = [x_flat, adj_block]
    for (lin, att, bias) in params:
        fin_l, hc_l = lin.shape
        in_specs.append(pl.BlockSpec((fin_l, hc_l), lambda b: (0, 0)))
        in_specs.append(pl.BlockSpec(memory_space=pltpu.MemorySpace.SMEM))
        in_specs.append(pl.BlockSpec((1, hc_l), lambda b: (0, 0)))
        inputs += [lin, att, bias]

    kernel = functools.partial(
        _mygat_fused_kernel, heads=heads, num_layers=len(params),
        negative_slope=float(negative_slope))

    # NOTE: at larger M (raised max_block_nodes) set
    # pltpu.CompilerParams(vmem_limit_bytes=...) explicitly on v7x (64 MiB VMEM).
    out = pl.pallas_call(
        kernel,
        out_shape=jax.ShapeDtypeStruct((B * N, hc_last), jnp.float32),
        grid_spec=pltpu.PrefetchScalarGridSpec(
            num_scalar_prefetch=0,
            grid=(num_blocks,),
            in_specs=in_specs,
            out_specs=pl.BlockSpec((M, hc_last), lambda b: (b, 0)),
            scratch_shapes=[pltpu.VMEM((M, scratch_w), jnp.float32)],
        ),
        compiler_params=pltpu.CompilerParams(
            dimension_semantics=("parallel",)),
    )(*inputs)
    return out.reshape(B, N, hc_last)


def init_mygat_params(key, sizes, heads):
    """Deterministic synthetic init matching MyGATConv.__init__ shapes:
    lin (Fin, H*Fout), att (H, Fout), bias (1, H*Fout) zero-init.  lin_dst is
    unused on the Tensor path of MyGATConv.forward and therefore not created."""
    layer_dims = [(sizes[s], sizes[s + 1]) for s in range(len(sizes) - 2)]
    layer_dims += [(sizes[-2], sizes[-1])]                 # final_layer
    params = []
    for fin, fout in layer_dims:
        key, k_lin, k_att = jax.random.split(key, 3)
        lin = jax.random.uniform(k_lin, (fin, heads * fout), jnp.float32, -0.1, 0.1)
        att = jax.random.uniform(k_att, (heads, fout), jnp.float32, -0.1, 0.1)
        bias = jnp.zeros((1, heads * fout), jnp.float32)   # init_zeros
        params.append((lin, att, bias))
    return params


# ----------------------------------------------------------------------------
# Pure-JAX f32 reference (dense masked math) for a sanity check.
# ----------------------------------------------------------------------------
def _gat_conv_ref(x, adj, lin, att, bias, heads, out_channels, negative_slope,
                  apply_relu):
    z = jnp.einsum('bnf,fk->bnk', x, lin)
    no_edge = adj[None] <= 0.0
    outs = []
    for h in range(heads):
        zh = z[..., h * out_channels:(h + 1) * out_channels]
        s = zh[:, :, None, :] + zh[:, None, :, :]
        s = jnp.where(s >= 0.0, s, negative_slope * s)
        logits = jnp.sum(s * att[h], axis=-1)
        logits = jnp.where(no_edge, -1e30, logits)
        m = jnp.max(logits, axis=-1, keepdims=True)
        e = jnp.where(no_edge, 0.0, jnp.exp(logits - m))
        d = jnp.sum(e, axis=-1, keepdims=True)
        alpha = e / jnp.where(d == 0.0, 1.0, d)
        outs.append(jnp.einsum('bij,bjc->bic', alpha, zh))
    out = jnp.concatenate(outs, axis=-1) + bias
    return jnp.maximum(out, 0.0) if apply_relu else out


def mygat_forward_ref(params, x, edge_index, *, heads, negative_slope=0.2):
    if x.ndim == 2:
        x = x[None]
    N = x.shape[1]
    src, dst = edge_index[0], edge_index[1]
    adj = jnp.zeros((N, N), jnp.float32).at[dst, src].set(1.0)
    for i, (lin, att, bias) in enumerate(params):
        fout = lin.shape[1] // heads
        x = _gat_conv_ref(x, adj, lin, att, bias, heads, fout,
                          negative_slope, apply_relu=(i != len(params) - 1))
    return x


# ----------------------------------------------------------------------------
if __name__ == "__main__":
    key = jax.random.PRNGKey(0)
    B, N = 2, 16

    # Deterministic graph: bidirectional ring + forward chords (unique edges,
    # no self loops -- MyGAT uses add_self_loops=False).
    idx = jnp.arange(N, dtype=jnp.int32)
    nxt = (idx + 1) % N
    chord = (idx + 3) % N
    edge_index = jnp.concatenate(
        [jnp.stack([idx, nxt]), jnp.stack([nxt, idx]), jnp.stack([idx, chord])],
        axis=1)                                            # (2, 48)

    # 2e-2 tolerance: bf16 MXU operands (f32 accumulate) + EUP approx reciprocal
    # vs. a pure-f32 reference.
    TOL = dict(rtol=2e-2, atol=2e-2)

    # Config A: multi-layer path (hidden GAT + ReLU + final GAT).  heads=1 here
    # because MyGAT's concat=True hidden layers only have consistent shapes for
    # >2 sizes when heads=1 (same constraint as the PyTorch module).
    sizes_a, heads_a = [16, 8, 4], 1
    key, kx, kp = jax.random.split(key, 3)
    x_a = jax.random.normal(kx, (B, N, sizes_a[0]), jnp.float32)
    params_a = init_mygat_params(kp, sizes_a, heads_a)
    out_a = mygat_forward(params_a, x_a, edge_index, heads=heads_a)
    jax.block_until_ready(out_a)
    ref_a = mygat_forward_ref(params_a, x_a, edge_index, heads=heads_a)
    assert out_a.shape == (B, N, heads_a * sizes_a[-1])
    assert jnp.allclose(out_a, ref_a, **TOL)

    # Config B: single (final) GATConv with 2 heads, concat -> (B, N, 2*4).
    sizes_b, heads_b = [16, 4], 2
    key, kx2, kp2 = jax.random.split(key, 3)
    x_b = jax.random.normal(kx2, (B, N, sizes_b[0]), jnp.float32)
    params_b = init_mygat_params(kp2, sizes_b, heads_b)
    out_b = mygat_forward(params_b, x_b, edge_index, heads=heads_b)
    jax.block_until_ready(out_b)
    ref_b = mygat_forward_ref(params_b, x_b, edge_index, heads=heads_b)
    assert out_b.shape == (B, N, heads_b * sizes_b[-1])
    assert jnp.allclose(out_b, ref_b, **TOL)

    print("KERNEL_OK")
</pallas_src>

<mosaic_0001>
module attributes {stable_mosaic.version = 11 : i64} {
  func.func @_mygat_fused_kernel(%arg0: i32, %arg1: memref<16x16xf32, #tpu.memory_space<vmem>>, %arg2: memref<16x16xbf16, #tpu.memory_space<vmem>>, %arg3: memref<16x8xf32, #tpu.memory_space<vmem>>, %arg4: memref<1x8xf32, #tpu.memory_space<smem>>, %arg5: memref<1x8xf32, #tpu.memory_space<vmem>>, %arg6: memref<8x4xf32, #tpu.memory_space<vmem>>, %arg7: memref<1x4xf32, #tpu.memory_space<smem>>, %arg8: memref<1x4xf32, #tpu.memory_space<vmem>>, %arg9: memref<16x4xf32, #tpu.memory_space<vmem>>, %arg10: memref<16x8xf32, #tpu.memory_space<vmem>>) attributes {dimension_semantics = [#tpu.dimension_semantics<parallel>], iteration_bounds = array<i64: 2>, scalar_prefetch = 0 : i64, scratch_operands = 1 : i64, tpu.core_type = #tpu.core_type<tc>, window_params = [{transform_indices = @transform_0, window_bounds = array<i64: 16, 16>}, {pipeline_mode = #tpu.pipeline_mode<synchronous>, transform_indices = @transform_1, window_bounds = array<i64: 16, 16>}, {pipeline_mode = #tpu.pipeline_mode<synchronous>, transform_indices = @transform_2, window_bounds = array<i64: 16, 8>}, {transform_indices = @transform_3, window_bounds = array<i64: 1, 8>}, {pipeline_mode = #tpu.pipeline_mode<synchronous>, transform_indices = @transform_4, window_bounds = array<i64: 1, 8>}, {pipeline_mode = #tpu.pipeline_mode<synchronous>, transform_indices = @transform_5, window_bounds = array<i64: 8, 4>}, {transform_indices = @transform_6, window_bounds = array<i64: 1, 4>}, {pipeline_mode = #tpu.pipeline_mode<synchronous>, transform_indices = @transform_7, window_bounds = array<i64: 1, 4>}, {transform_indices = @transform_8, window_bounds = array<i64: 16, 4>}]} {
    %c0 = arith.constant 0 : index
    %c0_0 = arith.constant 0 : index
    %0 = vector.load %arg2[%c0, %c0_0] : memref<16x16xbf16, #tpu.memory_space<vmem>>, vector<16x16xbf16>
    %1 = arith.extf %0 : vector<16x16xbf16> to vector<16x16xf32>
    %c0_1 = arith.constant 0 : index
    %c0_2 = arith.constant 0 : index
    %2 = vector.load %arg1[%c0_1, %c0_2] : memref<16x16xf32, #tpu.memory_space<vmem>>, vector<16x16xf32>
    %3 = arith.truncf %2 : vector<16x16xf32> to vector<16x16xbf16>
    %c0_3 = arith.constant 0 : index
    %c0_4 = arith.constant 0 : index
    %4 = vector.load %arg3[%c0_3, %c0_4] : memref<16x8xf32, #tpu.memory_space<vmem>>, vector<16x8xf32>
    %5 = arith.truncf %4 : vector<16x8xf32> to vector<16x8xbf16>
    %cst = arith.constant dense<0.000000e+00> : vector<16x8xf32>
    %6 = tpu.matmul %3, %5, %cst {dimension_numbers = #tpu.dot_dimension_numbers<[1], [0], [0], [1], [0, 0, 1, 1], [], []>} : vector<16x16xbf16>, vector<16x8xbf16>, vector<16x8xf32> -> vector<16x8xf32>
    %7 = tpu.transpose %6, [1, 0] : vector<16x8xf32> -> vector<8x16xf32>
    %c0_5 = arith.constant 0 : index
    %c0_6 = arith.constant 0 : index
    %8 = vector.load %arg5[%c0_5, %c0_6] : memref<1x8xf32, #tpu.memory_space<vmem>>, vector<1x8xf32>
    %cst_7 = arith.constant 0.000000e+00 : f32
    %9 = vector.broadcast %cst_7 : f32 to vector<16x16xf32>
    %10 = vector.extract_strided_slice %6 {offsets = [0, 0], sizes = [16, 1], strides = [1, 1]} : vector<16x8xf32> to vector<16x1xf32>
    %11 = vector.extract_strided_slice %7 {offsets = [0, 0], sizes = [1, 16], strides = [1, 1]} : vector<8x16xf32> to vector<1x16xf32>
    %12 = vector.broadcast %10 : vector<16x1xf32> to vector<16x16xf32>
    %13 = vector.broadcast %11 : vector<1x16xf32> to vector<16x16xf32>
    %14 = arith.addf %12, %13 : vector<16x16xf32>
    %cst_8 = arith.constant 2.000000e-01 : f32
    %15 = vector.broadcast %cst_8 : f32 to vector<16x16xf32>
    %16 = arith.mulf %15, %14 : vector<16x16xf32>
    %17 = arith.maximumf %14, %16 : vector<16x16xf32>
    %c0_9 = arith.constant 0 : index
    %c0_10 = arith.constant 0 : index
    %18 = memref.load %arg4[%c0_9, %c0_10] : memref<1x8xf32, #tpu.memory_space<smem>>
    %19 = vector.broadcast %18 : f32 to vector<16x16xf32>
    %20 = arith.mulf %19, %17 : vector<16x16xf32>
    %21 = arith.addf %9, %20 : vector<16x16xf32>
    %22 = vector.extract_strided_slice %6 {offsets = [0, 1], sizes = [16, 1], strides = [1, 1]} : vector<16x8xf32> to vector<16x1xf32>
    %23 = vector.extract_strided_slice %7 {offsets = [1, 0], sizes = [1, 16], strides = [1, 1]} : vector<8x16xf32> to vector<1x16xf32>
    %24 = vector.broadcast %22 : vector<16x1xf32> to vector<16x16xf32>
    %25 = vector.broadcast %23 : vector<1x16xf32> to vector<16x16xf32>
    %26 = arith.addf %24, %25 : vector<16x16xf32>
    %cst_11 = arith.constant 2.000000e-01 : f32
    %27 = vector.broadcast %cst_11 : f32 to vector<16x16xf32>
    %28 = arith.mulf %27, %26 : vector<16x16xf32>
    %29 = arith.maximumf %26, %28 : vector<16x16xf32>
    %c0_12 = arith.constant 0 : index
    %c1 = arith.constant 1 : index
    %30 = memref.load %arg4[%c0_12, %c1] : memref<1x8xf32, #tpu.memory_space<smem>>
    %31 = vector.broadcast %30 : f32 to vector<16x16xf32>
    %32 = arith.mulf %31, %29 : vector<16x16xf32>
    %33 = arith.addf %21, %32 : vector<16x16xf32>
    %34 = vector.extract_strided_slice %6 {offsets = [0, 2], sizes = [16, 1], strides = [1, 1]} : vector<16x8xf32> to vector<16x1xf32>
    %35 = vector.extract_strided_slice %7 {offsets = [2, 0], sizes = [1, 16], strides = [1, 1]} : vector<8x16xf32> to vector<1x16xf32>
    %36 = vector.broadcast %34 : vector<16x1xf32> to vector<16x16xf32>
    %37 = vector.broadcast %35 : vector<1x16xf32> to vector<16x16xf32>
    %38 = arith.addf %36, %37 : vector<16x16xf32>
    %cst_13 = arith.constant 2.000000e-01 : f32
    %39 = vector.broadcast %cst_13 : f32 to vector<16x16xf32>
    %40 = arith.mulf %39, %38 : vector<16x16xf32>
    %41 = arith.maximumf %38, %40 : vector<16x16xf32>
    %c0_14 = arith.constant 0 : index
    %c2 = arith.constant 2 : index
    %42 = memref.load %arg4[%c0_14, %c2] : memref<1x8xf32, #tpu.memory_space<smem>>
    %43 = vector.broadcast %42 : f32 to vector<16x16xf32>
    %44 = arith.mulf %43, %41 : vector<16x16xf32>
    %45 = arith.addf %33, %44 : vector<16x16xf32>
    %46 = vector.extract_strided_slice %6 {offsets = [0, 3], sizes = [16, 1], strides = [1, 1]} : vector<16x8xf32> to vector<16x1xf32>
    %47 = vector.extract_strided_slice %7 {offsets = [3, 0], sizes = [1, 16], strides = [1, 1]} : vector<8x16xf32> to vector<1x16xf32>
    %48 = vector.broadcast %46 : vector<16x1xf32> to vector<16x16xf32>
    %49 = vector.broadcast %47 : vector<1x16xf32> to vector<16x16xf32>
    %50 = arith.addf %48, %49 : vector<16x16xf32>
    %cst_15 = arith.constant 2.000000e-01 : f32
    %51 = vector.broadcast %cst_15 : f32 to vector<16x16xf32>
    %52 = arith.mulf %51, %50 : vector<16x16xf32>
    %53 = arith.maximumf %50, %52 : vector<16x16xf32>
    %c0_16 = arith.constant 0 : index
    %c3 = arith.constant 3 : index
    %54 = memref.load %arg4[%c0_16, %c3] : memref<1x8xf32, #tpu.memory_space<smem>>
    %55 = vector.broadcast %54 : f32 to vector<16x16xf32>
    %56 = arith.mulf %55, %53 : vector<16x16xf32>
    %57 = arith.addf %45, %56 : vector<16x16xf32>
    %58 = vector.extract_strided_slice %6 {offsets = [0, 4], sizes = [16, 1], strides = [1, 1]} : vector<16x8xf32> to vector<16x1xf32>
    %59 = vector.extract_strided_slice %7 {offsets = [4, 0], sizes = [1, 16], strides = [1, 1]} : vector<8x16xf32> to vector<1x16xf32>
    %60 = vector.broadcast %58 : vector<16x1xf32> to vector<16x16xf32>
    %61 = vector.broadcast %59 : vector<1x16xf32> to vector<16x16xf32>
    %62 = arith.addf %60, %61 : vector<16x16xf32>
    %cst_17 = arith.constant 2.000000e-01 : f32
    %63 = vector.broadcast %cst_17 : f32 to vector<16x16xf32>
    %64 = arith.mulf %63, %62 : vector<16x16xf32>
    %65 = arith.maximumf %62, %64 : vector<16x16xf32>
    %c0_18 = arith.constant 0 : index
    %c4 = arith.constant 4 : index
    %66 = memref.load %arg4[%c0_18, %c4] : memref<1x8xf32, #tpu.memory_space<smem>>
    %67 = vector.broadcast %66 : f32 to vector<16x16xf32>
    %68 = arith.mulf %67, %65 : vector<16x16xf32>
    %69 = arith.addf %57, %68 : vector<16x16xf32>
    %70 = vector.extract_strided_slice %6 {offsets = [0, 5], sizes = [16, 1], strides = [1, 1]} : vector<16x8xf32> to vector<16x1xf32>
    %71 = vector.extract_strided_slice %7 {offsets = [5, 0], sizes = [1, 16], strides = [1, 1]} : vector<8x16xf32> to vector<1x16xf32>
    %72 = vector.broadcast %70 : vector<16x1xf32> to vector<16x16xf32>
    %73 = vector.broadcast %71 : vector<1x16xf32> to vector<16x16xf32>
    %74 = arith.addf %72, %73 : vector<16x16xf32>
    %cst_19 = arith.constant 2.000000e-01 : f32
    %75 = vector.broadcast %cst_19 : f32 to vector<16x16xf32>
    %76 = arith.mulf %75, %74 : vector<16x16xf32>
    %77 = arith.maximumf %74, %76 : vector<16x16xf32>
    %c0_20 = arith.constant 0 : index
    %c5 = arith.constant 5 : index
    %78 = memref.load %arg4[%c0_20, %c5] : memref<1x8xf32, #tpu.memory_space<smem>>
    %79 = vector.broadcast %78 : f32 to vector<16x16xf32>
    %80 = arith.mulf %79, %77 : vector<16x16xf32>
    %81 = arith.addf %69, %80 : vector<16x16xf32>
    %82 = vector.extract_strided_slice %6 {offsets = [0, 6], sizes = [16, 1], strides = [1, 1]} : vector<16x8xf32> to vector<16x1xf32>
    %83 = vector.extract_strided_slice %7 {offsets = [6, 0], sizes = [1, 16], strides = [1, 1]} : vector<8x16xf32> to vector<1x16xf32>
    %84 = vector.broadcast %82 : vector<16x1xf32> to vector<16x16xf32>
    %85 = vector.broadcast %83 : vector<1x16xf32> to vector<16x16xf32>
    %86 = arith.addf %84, %85 : vector<16x16xf32>
    %cst_21 = arith.constant 2.000000e-01 : f32
    %87 = vector.broadcast %cst_21 : f32 to vector<16x16xf32>
    %88 = arith.mulf %87, %86 : vector<16x16xf32>
    %89 = arith.maximumf %86, %88 : vector<16x16xf32>
    %c0_22 = arith.constant 0 : index
    %c6 = arith.constant 6 : index
    %90 = memref.load %arg4[%c0_22, %c6] : memref<1x8xf32, #tpu.memory_space<smem>>
    %91 = vector.broadcast %90 : f32 to vector<16x16xf32>
    %92 = arith.mulf %91, %89 : vector<16x16xf32>
    %93 = arith.addf %81, %92 : vector<16x16xf32>
    %94 = vector.extract_strided_slice %6 {offsets = [0, 7], sizes = [16, 1], strides = [1, 1]} : vector<16x8xf32> to vector<16x1xf32>
    %95 = vector.extract_strided_slice %7 {offsets = [7, 0], sizes = [1, 16], strides = [1, 1]} : vector<8x16xf32> to vector<1x16xf32>
    %96 = vector.broadcast %94 : vector<16x1xf32> to vector<16x16xf32>
    %97 = vector.broadcast %95 : vector<1x16xf32> to vector<16x16xf32>
    %98 = arith.addf %96, %97 : vector<16x16xf32>
    %cst_23 = arith.constant 2.000000e-01 : f32
    %99 = vector.broadcast %cst_23 : f32 to vector<16x16xf32>
    %100 = arith.mulf %99, %98 : vector<16x16xf32>
    %101 = arith.maximumf %98, %100 : vector<16x16xf32>
    %c0_24 = arith.constant 0 : index
    %c7 = arith.constant 7 : index
    %102 = memref.load %arg4[%c0_24, %c7] : memref<1x8xf32, #tpu.memory_space<smem>>
    %103 = vector.broadcast %102 : f32 to vector<16x16xf32>
    %104 = arith.mulf %103, %101 : vector<16x16xf32>
    %105 = arith.addf %93, %104 : vector<16x16xf32>
    %cst_25 = arith.constant dense<0xFF800000> : vector<16xf32>
    %106 = vector.multi_reduction <maximumf>, %105, %cst_25 [1] : vector<16x16xf32> to vector<16xf32>
    %107 = vector.shape_cast %106 : vector<16xf32> to vector<16x1xf32>
    %108 = vector.broadcast %107 : vector<16x1xf32> to vector<16x16xf32>
    %109 = arith.subf %105, %108 : vector<16x16xf32>
    %110 = math.exp %109 : vector<16x16xf32>
    %111 = arith.mulf %110, %1 : vector<16x16xf32>
    %cst_26 = arith.constant dense<0.000000e+00> : vector<16xf32>
    %112 = vector.multi_reduction <add>, %111, %cst_26 [1] : vector<16x16xf32> to vector<16xf32>
    %113 = vector.shape_cast %112 : vector<16xf32> to vector<16x1xf32>
    %cst_27 = arith.constant 0.000000e+00 : f32
    %114 = vector.broadcast %cst_27 : f32 to vector<16x1xf32>
    %115 = arith.cmpf ole, %113, %114 : vector<16x1xf32>
    %116 = arith.extui %115 : vector<16x1xi1> to vector<16x1xi32>
    %117 = arith.sitofp %116 : vector<16x1xi32> to vector<16x1xf32>
    %118 = arith.addf %113, %117 : vector<16x1xf32>
    %119 = arith.truncf %111 : vector<16x16xf32> to vector<16x16xbf16>
    %120 = arith.truncf %6 : vector<16x8xf32> to vector<16x8xbf16>
    %cst_28 = arith.constant dense<0.000000e+00> : vector<16x8xf32>
    %121 = tpu.matmul %119, %120, %cst_28 {dimension_numbers = #tpu.dot_dimension_numbers<[1], [0], [0], [1], [0, 0, 1, 1], [], []>} : vector<16x16xbf16>, vector<16x8xbf16>, vector<16x8xf32> -> vector<16x8xf32>
    %122 = tpu.reciprocal %118 {approx = true} : vector<16x1xf32> -> vector<16x1xf32>
    %123 = vector.broadcast %122 : vector<16x1xf32> to vector<16x8xf32>
    %124 = arith.mulf %121, %123 : vector<16x8xf32>
    %125 = vector.broadcast %8 : vector<1x8xf32> to vector<16x8xf32>
    %126 = arith.addf %124, %125 : vector<16x8xf32>
    %cst_29 = arith.constant 0.000000e+00 : f32
    %127 = vector.broadcast %cst_29 : f32 to vector<16x8xf32>
    %128 = arith.maximumf %126, %127 : vector<16x8xf32>
    %c0_30 = arith.constant 0 : index
    %c0_31 = arith.constant 0 : index
    %129 = vector.load %arg10[%c0_30, %c0_31] : memref<16x8xf32, #tpu.memory_space<vmem>>, vector<16x8xf32>
    tpu.vector_store %arg10[%c0_30, %c0_31], %128 {strides = array<i32>} : memref<16x8xf32, #tpu.memory_space<vmem>>, vector<16x8xf32>,
    %c0_32 = arith.constant 0 : index
    %c0_33 = arith.constant 0 : index
    %130 = vector.load %arg10[%c0_32, %c0_33] : memref<16x8xf32, #tpu.memory_space<vmem>>, vector<16x8xf32>
    %131 = arith.truncf %130 : vector<16x8xf32> to vector<16x8xbf16>
    %c0_34 = arith.constant 0 : index
    %c0_35 = arith.constant 0 : index
    %132 = vector.load %arg6[%c0_34, %c0_35] : memref<8x4xf32, #tpu.memory_space<vmem>>, vector<8x4xf32>
    %133 = arith.truncf %132 : vector<8x4xf32> to vector<8x4xbf16>
    %cst_36 = arith.constant dense<0.000000e+00> : vector<16x4xf32>
    %134 = tpu.matmul %131, %133, %cst_36 {dimension_numbers = #tpu.dot_dimension_numbers<[1], [0], [0], [1], [0, 0, 1, 1], [], []>} : vector<16x8xbf16>, vector<8x4xbf16>, vector<16x4xf32> -> vector<16x4xf32>
    %135 = tpu.transpose %134, [1, 0] : vector<16x4xf32> -> vector<4x16xf32>
    %c0_37 = arith.constant 0 : index
    %c0_38 = arith.constant 0 : index
    %136 = vector.load %arg8[%c0_37, %c0_38] : memref<1x4xf32, #tpu.memory_space<vmem>>, vector<1x4xf32>
    %cst_39 = arith.constant 0.000000e+00 : f32
    %137 = vector.broadcast %cst_39 : f32 to vector<16x16xf32>
    %138 = vector.extract_strided_slice %134 {offsets = [0, 0], sizes = [16, 1], strides = [1, 1]} : vector<16x4xf32> to vector<16x1xf32>
    %139 = vector.extract_strided_slice %135 {offsets = [0, 0], sizes = [1, 16], strides = [1, 1]} : vector<4x16xf32> to vector<1x16xf32>
    %140 = vector.broadcast %138 : vector<16x1xf32> to vector<16x16xf32>
    %141 = vector.broadcast %139 : vector<1x16xf32> to vector<16x16xf32>
    %142 = arith.addf %140, %141 : vector<16x16xf32>
    %cst_40 = arith.constant 2.000000e-01 : f32
    %143 = vector.broadcast %cst_40 : f32 to vector<16x16xf32>
    %144 = arith.mulf %143, %142 : vector<16x16xf32>
    %145 = arith.maximumf %142, %144 : vector<16x16xf32>
    %c0_41 = arith.constant 0 : index
    %c0_42 = arith.constant 0 : index
    %146 = memref.load %arg7[%c0_41, %c0_42] : memref<1x4xf32, #tpu.memory_space<smem>>
    %147 = vector.broadcast %146 : f32 to vector<16x16xf32>
    %148 = arith.mulf %147, %145 : vector<16x16xf32>
    %149 = arith.addf %137, %148 : vector<16x16xf32>
    %150 = vector.extract_strided_slice %134 {offsets = [0, 1], sizes = [16, 1], strides = [1, 1]} : vector<16x4xf32> to vector<16x1xf32>
    %151 = vector.extract_strided_slice %135 {offsets = [1, 0], sizes = [1, 16], strides = [1, 1]} : vector<4x16xf32> to vector<1x16xf32>
    %152 = vector.broadcast %150 : vector<16x1xf32> to vector<16x16xf32>
    %153 = vector.broadcast %151 : vector<1x16xf32> to vector<16x16xf32>
    %154 = arith.addf %152, %153 : vector<16x16xf32>
    %cst_43 = arith.constant 2.000000e-01 : f32
    %155 = vector.broadcast %cst_43 : f32 to vector<16x16xf32>
    %156 = arith.mulf %155, %154 : vector<16x16xf32>
    %157 = arith.maximumf %154, %156 : vector<16x16xf32>
    %c0_44 = arith.constant 0 : index
    %c1_45 = arith.constant 1 : index
    %158 = memref.load %arg7[%c0_44, %c1_45] : memref<1x4xf32, #tpu.memory_space<smem>>
    %159 = vector.broadcast %158 : f32 to vector<16x16xf32>
    %160 = arith.mulf %159, %157 : vector<16x16xf32>
    %161 = arith.addf %149, %160 : vector<16x16xf32>
    %162 = vector.extract_strided_slice %134 {offsets = [0, 2], sizes = [16, 1], strides = [1, 1]} : vector<16x4xf32> to vector<16x1xf32>
    %163 = vector.extract_strided_slice %135 {offsets = [2, 0], sizes = [1, 16], strides = [1, 1]} : vector<4x16xf32> to vector<1x16xf32>
    %164 = vector.broadcast %162 : vector<16x1xf32> to vector<16x16xf32>
    %165 = vector.broadcast %163 : vector<1x16xf32> to vector<16x16xf32>
    %166 = arith.addf %164, %165 : vector<16x16xf32>
    %cst_46 = arith.constant 2.000000e-01 : f32
    %167 = vector.broadcast %cst_46 : f32 to vector<16x16xf32>
    %168 = arith.mulf %167, %166 : vector<16x16xf32>
    %169 = arith.maximumf %166, %168 : vector<16x16xf32>
    %c0_47 = arith.constant 0 : index
    %c2_48 = arith.constant 2 : index
    %170 = memref.load %arg7[%c0_47, %c2_48] : memref<1x4xf32, #tpu.memory_space<smem>>
    %171 = vector.broadcast %170 : f32 to vector<16x16xf32>
    %172 = arith.mulf %171, %169 : vector<16x16xf32>
    %173 = arith.addf %161, %172 : vector<16x16xf32>
    %174 = vector.extract_strided_slice %134 {offsets = [0, 3], sizes = [16, 1], strides = [1, 1]} : vector<16x4xf32> to vector<16x1xf32>
    %175 = vector.extract_strided_slice %135 {offsets = [3, 0], sizes = [1, 16], strides = [1, 1]} : vector<4x16xf32> to vector<1x16xf32>
    %176 = vector.broadcast %174 : vector<16x1xf32> to vector<16x16xf32>
    %177 = vector.broadcast %175 : vector<1x16xf32> to vector<16x16xf32>
    %178 = arith.addf %176, %177 : vector<16x16xf32>
    %cst_49 = arith.constant 2.000000e-01 : f32
    %179 = vector.broadcast %cst_49 : f32 to vector<16x16xf32>
    %180 = arith.mulf %179, %178 : vector<16x16xf32>
    %181 = arith.maximumf %178, %180 : vector<16x16xf32>
    %c0_50 = arith.constant 0 : index
    %c3_51 = arith.constant 3 : index
    %182 = memref.load %arg7[%c0_50, %c3_51] : memref<1x4xf32, #tpu.memory_space<smem>>
    %183 = vector.broadcast %182 : f32 to vector<16x16xf32>
    %184 = arith.mulf %183, %181 : vector<16x16xf32>
    %185 = arith.addf %173, %184 : vector<16x16xf32>
    %cst_52 = arith.constant dense<0xFF800000> : vector<16xf32>
    %186 = vector.multi_reduction <maximumf>, %185, %cst_52 [1] : vector<16x16xf32> to vector<16xf32>
    %187 = vector.shape_cast %186 : vector<16xf32> to vector<16x1xf32>
    %188 = vector.broadcast %187 : vector<16x1xf32> to vector<16x16xf32>
    %189 = arith.subf %185, %188 : vector<16x16xf32>
    %190 = math.exp %189 : vector<16x16xf32>
    %191 = arith.mulf %190, %1 : vector<16x16xf32>
    %cst_53 = arith.constant dense<0.000000e+00> : vector<16xf32>
    %192 = vector.multi_reduction <add>, %191, %cst_53 [1] : vector<16x16xf32> to vector<16xf32>
    %193 = vector.shape_cast %192 : vector<16xf32> to vector<16x1xf32>
    %cst_54 = arith.constant 0.000000e+00 : f32
    %194 = vector.broadcast %cst_54 : f32 to vector<16x1xf32>
    %195 = arith.cmpf ole, %193, %194 : vector<16x1xf32>
    %196 = arith.extui %195 : vector<16x1xi1> to vector<16x1xi32>
    %197 = arith.sitofp %196 : vector<16x1xi32> to vector<16x1xf32>
    %198 = arith.addf %193, %197 : vector<16x1xf32>
    %199 = arith.truncf %191 : vector<16x16xf32> to vector<16x16xbf16>
    %200 = arith.truncf %134 : vector<16x4xf32> to vector<16x4xbf16>
    %cst_55 = arith.constant dense<0.000000e+00> : vector<16x4xf32>
    %201 = tpu.matmul %199, %200, %cst_55 {dimension_numbers = #tpu.dot_dimension_numbers<[1], [0], [0], [1], [0, 0, 1, 1], [], []>} : vector<16x16xbf16>, vector<16x4xbf16>, vector<16x4xf32> -> vector<16x4xf32>
    %202 = tpu.reciprocal %198 {approx = true} : vector<16x1xf32> -> vector<16x1xf32>
    %203 = vector.broadcast %202 : vector<16x1xf32> to vector<16x4xf32>
    %204 = arith.mulf %201, %203 : vector<16x4xf32>
    %205 = vector.broadcast %136 : vector<1x4xf32> to vector<16x4xf32>
    %206 = arith.addf %204, %205 : vector<16x4xf32>
    %c0_56 = arith.constant 0 : index
    %c0_57 = arith.constant 0 : index
    %207 = vector.load %arg9[%c0_56, %c0_57] : memref<16x4xf32, #tpu.memory_space<vmem>>, vector<16x4xf32>
    tpu.vector_store %arg9[%c0_56, %c0_57], %206 {strides = array<i32>} : memref<16x4xf32, #tpu.memory_space<vmem>>, vector<16x4xf32>,
    return
  }
  func.func @transform_0(%arg0: i32) -> (i32, i32) {
    %c0_i32 = arith.constant 0 : i32
    %c0_i32_0 = arith.constant 0 : i32
    return %arg0, %c0_i32 : i32, i32
  }
  func.func @transform_1(%arg0: i32) -> (i32, i32) {
    %c0_i32 = arith.constant 0 : i32
    %c0_i32_0 = arith.constant 0 : i32
    %c0_i32_1 = arith.constant 0 : i32
    return %c0_i32, %c0_i32_0 : i32, i32
  }
  func.func @transform_2(%arg0: i32) -> (i32, i32) {
    %c0_i32 = arith.constant 0 : i32
    %c0_i32_0 = arith.constant 0 : i32
    %c0_i32_1 = arith.constant 0 : i32
    return %c0_i32, %c0_i32_0 : i32, i32
  }
  func.func @transform_3(%arg0: i32) -> (i32, i32) {
    %c0_i32 = arith.constant 0 : i32
    %c0_i32_0 = arith.constant 0 : i32
    %c0_i32_1 = arith.constant 0 : i32
    return %c0_i32, %c0_i32_0 : i32, i32
  }
  func.func @transform_4(%arg0: i32) -> (i32, i32) {
    %c0_i32 = arith.constant 0 : i32
    %c0_i32_0 = arith.constant 0 : i32
    %c0_i32_1 = arith.constant 0 : i32
    return %c0_i32, %c0_i32_0 : i32, i32
  }
  func.func @transform_5(%arg0: i32) -> (i32, i32) {
    %c0_i32 = arith.constant 0 : i32
    %c0_i32_0 = arith.constant 0 : i32
    %c0_i32_1 = arith.constant 0 : i32
    return %c0_i32, %c0_i32_0 : i32, i32
  }
  func.func @transform_6(%arg0: i32) -> (i32, i32) {
    %c0_i32 = arith.constant 0 : i32
    %c0_i32_0 = arith.constant 0 : i32
    %c0_i32_1 = arith.constant 0 : i32
    return %c0_i32, %c0_i32_0 : i32, i32
  }
  func.func @transform_7(%arg0: i32) -> (i32, i32) {
    %c0_i32 = arith.constant 0 : i32
    %c0_i32_0 = arith.constant 0 : i32
    %c0_i32_1 = arith.constant 0 : i32
    return %c0_i32, %c0_i32_0 : i32, i32
  }
  func.func @transform_8(%arg0: i32) -> (i32, i32) {
    %c0_i32 = arith.constant 0 : i32
    %c0_i32_0 = arith.constant 0 : i32
    return %arg0, %c0_i32 : i32, i32
  }
}

</mosaic_0001>

<llo_original>
// kernel: tpu_custom_call.1
$region0: #{tpu_custom_call.1}
  #allocation0 [shape = 'u32[]', space=smem, size = 0x4, offset = 0x4, fixed_abs, tag = 'smem constant byte address 0x4 - core index']
  #allocation1 [shape = 'u32[144,128]{1,0:T(1,128)}', space=vmem, size = 0x12000, scoped, tag = 'internal scratch']
  #allocation2 [shape = 'f32[16,8]{1,0:T(8,128)}', space=vmem, size = 0x2000, scoped, tag = 'scratch operand']
  %s0 = inlined_call_operand.vmem [shape: f32[32,16], index: 0, kind: input, shape index: {}]
  %s1 = inlined_call_operand.vmem [shape: bf16[16,16], index: 1, kind: input, shape index: {}]
  %s2 = inlined_call_operand.vmem [shape: f32[16,8], index: 2, kind: input, shape index: {}]
  %s3 = inlined_call_operand.vmem [shape: f32[1,8], index: 3, kind: input, shape index: {}]
  %s4 = inlined_call_operand.vmem [shape: f32[1,8], index: 4, kind: input, shape index: {}]
  %s5 = inlined_call_operand.vmem [shape: f32[8,4], index: 5, kind: input, shape index: {}]
  %s6 = inlined_call_operand.vmem [shape: f32[1,4], index: 6, kind: input, shape index: {}]
  %s7 = inlined_call_operand.vmem [shape: f32[1,4], index: 7, kind: input, shape index: {}]
  %s8 = inlined_call_operand.vmem [shape: f32[32,4], index: 8, kind: output, shape index: {}]
  %s9 = sld [smem:[#allocation0]]
  $region73: #{tpu_custom_call.1} parent=0
    _
  %s11 = ssub.s32 1, %s9
  %s12 = scalar_select 0, %s11, %s9
  $region1: #{tpu_custom_call.1} parent=0
    #allocation3 [shape = 'u8[512]{0}', space=smem, size = 0x200, scoped, tag = 'input window, operand 3, single buffered']
    #allocation4 [shape = 's32[2]{0}', space=sflag, size = 0x8, scoped, tag = 'scoped memory for tpu_custom_call.1']
    #allocation5 [shape = 'u8[512]{0}', space=smem, size = 0x200, scoped, tag = 'input window, operand 6, single buffered']
    #allocation6 [shape = 's32[1]{0}', space=sflag, size = 0x4, scoped, tag = 'scoped memory for tpu_custom_call.1']
    %13 = vsyncpa [#allocation4], 0
    %14 = vsyncpa [#allocation6], 0
    loop: start=0, step=1, limit=4
    $region2: #{tpu_custom_call.1} parent=1 // loop_pre_header
      _
    $region3: #{tpu_custom_call.1} parent=1 // loop_header
      %s16 = sphi 0, %s20
      %p17 = scmp.ge.s32.totalorder %s16, 4
      %s26 = sphi 0, %s28
      %s29 = sphi 0, %s26
      %s30 = sphi 0, %s29
      %s46 = sphi 0, %s30
      %s50 = sphi 0, %s50
      %s52 = sphi 0, %s50
      %s53 = sphi 0, %s52
      %s67 = sphi 0, %s53
      %s71 = sphi 0, %s71
      %s73 = sphi 0, %s71
      %s74 = sphi 0, %s73
      %s88 = sphi 0, %s74
      %s92 = sphi 0, %s92
      %s94 = sphi 0, %s92
      %s95 = sphi 0, %s94
      %s109 = sphi 0, %s95
      %s113 = sphi 0, %s113
      %s115 = sphi 0, %s113
      %s116 = sphi 0, %s115
      %s130 = sphi 0, %s116
      %s134 = sphi 0, %s134
      %s136 = sphi 0, %s134
      %s137 = sphi 0, %s136
      %s151 = sphi 0, %s137
      %s155 = sphi 0, %s155
      %s157 = sphi 0, %s155
      %s158 = sphi 0, %s157
      %s172 = sphi 0, %s158
      %s176 = sphi 0, %s176
      %s178 = sphi 0, %s176
      %s179 = sphi 0, %s178
      %s193 = sphi 0, %s179
      %s199 = sphi 0, %s201
      %s202 = sphi 0, %s199
      %s203 = sphi 0, %s202
      %s219 = sphi 0, %s203
    $region4: #{tpu_custom_call.1} parent=1 // loop_header_branch
      %19 = sbr.rel (%p17) target = $region8
    $region5: #{tpu_custom_call.1} parent=1 // loop_body
      %s21 = ssub.s32 %s16, 1
      %s22 = ssub.s32 %s16, 2
      %s23 = sadd.s32 %s16, 1
      %s24 = ssub.s32 %s16, %s23
      %p25 = scmp.eq.s32.totalorder %s24, 0
      %s27 = sadd.s32 %s26, 1
      %s28 = scalar_select %p25, %s26, %s27
      %p31 = pneg %p25
      %p32 = scmp.eq.s32.totalorder %s16, 1
      %p33 = por %p31, %p32
      %p34 = scmp.ne.s32.totalorder %s26, %s29
      %p35 = scmp.eq.s32.totalorder %s16, 0
      %p36 = por %p34, %p35
      %p37 = scmp.ne.s32.totalorder %s26, %s29
      %p38 = scmp.eq.s32.totalorder %s21, 1
      %p39 = por %p37, %p38
      %p40 = scmp.ne.s32.totalorder %s29, %s30
      %p41 = scmp.eq.s32.totalorder %s21, 0
      %p42 = por %p40, %p41
      %p43 = scmp.ne.s32.totalorder %s29, %s30
      %p44 = scmp.eq.s32.totalorder %s22, 1
      %p45 = por %p43, %p44
      %p47 = scmp.ne.s32.totalorder %s30, %s46
      %p48 = scmp.eq.s32.totalorder %s22, 0
      %p49 = por %p47, %p48
      %s51 = sadd.s32 %s50, 1
      %p54 = scmp.eq.s32.totalorder %s16, 1
      %p55 = scmp.ne.s32.totalorder %s50, %s52
      %p56 = scmp.eq.s32.totalorder %s16, 0
      %p57 = por %p55, %p56
      %p58 = scmp.ne.s32.totalorder %s50, %s52
      %p59 = scmp.eq.s32.totalorder %s21, 1
      %p60 = por %p58, %p59
      %p61 = scmp.ne.s32.totalorder %s52, %s53
      %p62 = scmp.eq.s32.totalorder %s21, 0
      %p63 = por %p61, %p62
      %p64 = scmp.ne.s32.totalorder %s52, %s53
      %p65 = scmp.eq.s32.totalorder %s22, 1
      %p66 = por %p64, %p65
      %p68 = scmp.ne.s32.totalorder %s53, %s67
      %p69 = scmp.eq.s32.totalorder %s22, 0
      %p70 = por %p68, %p69
      %s72 = sadd.s32 %s71, 1
      %p75 = scmp.eq.s32.totalorder %s16, 1
      %p76 = scmp.ne.s32.totalorder %s71, %s73
      %p77 = scmp.eq.s32.totalorder %s16, 0
      %p78 = por %p76, %p77
      %p79 = scmp.ne.s32.totalorder %s71, %s73
      %p80 = scmp.eq.s32.totalorder %s21, 1
      %p81 = por %p79, %p80
      %p82 = scmp.ne.s32.totalorder %s73, %s74
      %p83 = scmp.eq.s32.totalorder %s21, 0
      %p84 = por %p82, %p83
      %p85 = scmp.ne.s32.totalorder %s73, %s74
      %p86 = scmp.eq.s32.totalorder %s22, 1
      %p87 = por %p85, %p86
      %p89 = scmp.ne.s32.totalorder %s74, %s88
      %p90 = scmp.eq.s32.totalorder %s22, 0
      %p91 = por %p89, %p90
      %s93 = sadd.s32 %s92, 1
      %p96 = scmp.eq.s32.totalorder %s16, 1
      %p97 = scmp.ne.s32.totalorder %s92, %s94
      %p98 = scmp.eq.s32.totalorder %s16, 0
      %p99 = por %p97, %p98
      %p100 = scmp.ne.s32.totalorder %s92, %s94
      %p101 = scmp.eq.s32.totalorder %s21, 1
      %p102 = por %p100, %p101
      %p103 = scmp.ne.s32.totalorder %s94, %s95
      %p104 = scmp.eq.s32.totalorder %s21, 0
      %p105 = por %p103, %p104
      %p106 = scmp.ne.s32.totalorder %s94, %s95
      %p107 = scmp.eq.s32.totalorder %s22, 1
      %p108 = por %p106, %p107
      %p110 = scmp.ne.s32.totalorder %s95, %s109
      %p111 = scmp.eq.s32.totalorder %s22, 0
      %p112 = por %p110, %p111
      %s114 = sadd.s32 %s113, 1
      %p117 = scmp.eq.s32.totalorder %s16, 1
      %p118 = scmp.ne.s32.totalorder %s113, %s115
      %p119 = scmp.eq.s32.totalorder %s16, 0
      %p120 = por %p118, %p119
      %p121 = scmp.ne.s32.totalorder %s113, %s115
      %p122 = scmp.eq.s32.totalorder %s21, 1
      %p123 = por %p121, %p122
      %p124 = scmp.ne.s32.totalorder %s115, %s116
      %p125 = scmp.eq.s32.totalorder %s21, 0
      %p126 = por %p124, %p125
      %p127 = scmp.ne.s32.totalorder %s115, %s116
      %p128 = scmp.eq.s32.totalorder %s22, 1
      %p129 = por %p127, %p128
      %p131 = scmp.ne.s32.totalorder %s116, %s130
      %p132 = scmp.eq.s32.totalorder %s22, 0
      %p133 = por %p131, %p132
      %s135 = sadd.s32 %s134, 1
      %p138 = scmp.eq.s32.totalorder %s16, 1
      %p139 = scmp.ne.s32.totalorder %s134, %s136
      %p140 = scmp.eq.s32.totalorder %s16, 0
      %p141 = por %p139, %p140
      %p142 = scmp.ne.s32.totalorder %s134, %s136
      %p143 = scmp.eq.s32.totalorder %s21, 1
      %p144 = por %p142, %p143
      %p145 = scmp.ne.s32.totalorder %s136, %s137
      %p146 = scmp.eq.s32.totalorder %s21, 0
      %p147 = por %p145, %p146
      %p148 = scmp.ne.s32.totalorder %s136, %s137
      %p149 = scmp.eq.s32.totalorder %s22, 1
      %p150 = por %p148, %p149
      %p152 = scmp.ne.s32.totalorder %s137, %s151
      %p153 = scmp.eq.s32.totalorder %s22, 0
      %p154 = por %p152, %p153
      %s156 = sadd.s32 %s155, 1
      %p159 = scmp.eq.s32.totalorder %s16, 1
      %p160 = scmp.ne.s32.totalorder %s155, %s157
      %p161 = scmp.eq.s32.totalorder %s16, 0
      %p162 = por %p160, %p161
      %p163 = scmp.ne.s32.totalorder %s155, %s157
      %p164 = scmp.eq.s32.totalorder %s21, 1
      %p165 = por %p163, %p164
      %p166 = scmp.ne.s32.totalorder %s157, %s158
      %p167 = scmp.eq.s32.totalorder %s21, 0
      %p168 = por %p166, %p167
      %p169 = scmp.ne.s32.totalorder %s157, %s158
      %p170 = scmp.eq.s32.totalorder %s22, 1
      %p171 = por %p169, %p170
      %p173 = scmp.ne.s32.totalorder %s158, %s172
      %p174 = scmp.eq.s32.totalorder %s22, 0
      %p175 = por %p173, %p174
      %s177 = sadd.s32 %s176, 1
      %p180 = scmp.eq.s32.totalorder %s16, 1
      %p181 = scmp.ne.s32.totalorder %s176, %s178
      %p182 = scmp.eq.s32.totalorder %s16, 0
      %p183 = por %p181, %p182
      %p184 = scmp.ne.s32.totalorder %s176, %s178
      %p185 = scmp.eq.s32.totalorder %s21, 1
      %p186 = por %p184, %p185
      %p187 = scmp.ne.s32.totalorder %s178, %s179
      %p188 = scmp.eq.s32.totalorder %s21, 0
      %p189 = por %p187, %p188
      %p190 = scmp.ne.s32.totalorder %s178, %s179
      %p191 = scmp.eq.s32.totalorder %s22, 1
      %p192 = por %p190, %p191
      %p194 = scmp.ne.s32.totalorder %s179, %s193
      %p195 = scmp.eq.s32.totalorder %s22, 0
      %p196 = por %p194, %p195
      %s197 = ssub.s32 %s16, %s23
      %p198 = scmp.eq.s32.totalorder %s197, 0
      %s200 = sadd.s32 %s199, 1
      %s201 = scalar_select %p198, %s199, %s200
      %p204 = pneg %p198
      %p205 = scmp.eq.s32.totalorder %s16, 1
      %p206 = por %p204, %p205
      %p207 = scmp.ne.s32.totalorder %s199, %s202
      %p208 = scmp.eq.s32.totalorder %s16, 0
      %p209 = por %p207, %p208
      %p210 = scmp.ne.s32.totalorder %s199, %s202
      %p211 = scmp.eq.s32.totalorder %s21, 1
      %p212 = por %p210, %p211
      %p213 = scmp.ne.s32.totalorder %s202, %s203
      %p214 = scmp.eq.s32.totalorder %s21, 0
      %p215 = por %p213, %p214
      %p216 = scmp.ne.s32.totalorder %s202, %s203
      %p217 = scmp.eq.s32.totalorder %s22, 1
      %p218 = por %p216, %p217
      %p220 = scmp.ne.s32.totalorder %s203, %s219
      %p221 = scmp.eq.s32.totalorder %s22, 0
      %p222 = por %p220, %p221
      %p223 = scmp.le.s32.totalorder 1, %s16
      %p224 = scmp.lt.s32.totalorder %s16, 3
      %p225 = pnand %p223, %p224
      %p226 = pneg %p225
      // Predicated region
      $region9: #{tpu_custom_call.1} parent=5 // pred_check
        _
      $region10: #{tpu_custom_call.1} parent=5 // pred_check_branch
        %228 = sbr.rel (%p225) target = $region12
      $region11: #{tpu_custom_call.1} parent=5 // pred_region
        %s229 = ssub.s32 %s16, 1
        // Predicated region
        $region13: #{tpu_custom_call.1} parent=11 // pred_check
          %p230 = pneg %p63
        $region14: #{tpu_custom_call.1} parent=11 // pred_check_branch
          %232 = sbr.rel (%p230) target = $region16
        $region15: #{tpu_custom_call.1} parent=11 // pred_region
          _
        $region16: #{tpu_custom_call.1} parent=11 // pred_fallthru
          _
        // Predicated region
        $region17: #{tpu_custom_call.1} parent=11 // pred_check
          %p233 = pneg %p84
        $region18: #{tpu_custom_call.1} parent=11 // pred_check_branch
          %235 = sbr.rel (%p233) target = $region20
        $region19: #{tpu_custom_call.1} parent=11 // pred_region
          _
        $region20: #{tpu_custom_call.1} parent=11 // pred_fallthru
          _
        // Predicated region
        $region21: #{tpu_custom_call.1} parent=11 // pred_check
          %p236 = pneg %p105
        $region22: #{tpu_custom_call.1} parent=11 // pred_check_branch
          %238 = sbr.rel (%p236) target = $region24
        $region23: #{tpu_custom_call.1} parent=11 // pred_region
          %s240 = ssub.s32 16, 16
          %241 = vsyncadd [#allocation4], %s240
          %s243 = sshll.u32 %s3, 4
          %s244 = int_to_ptr.vmem [resolvable:$true] %s243
          %246 = dma.vmem_to_smem %s244, 16, [#allocation3], [#allocation4]
        $region24: #{tpu_custom_call.1} parent=11 // pred_fallthru
          _
        // Predicated region
        $region25: #{tpu_custom_call.1} parent=11 // pred_check
          %p247 = pneg %p126
        $region26: #{tpu_custom_call.1} parent=11 // pred_check_branch
          %249 = sbr.rel (%p247) target = $region28
        $region27: #{tpu_custom_call.1} parent=11 // pred_region
          _
        $region28: #{tpu_custom_call.1} parent=11 // pred_fallthru
          _
        // Predicated region
        $region29: #{tpu_custom_call.1} parent=11 // pred_check
          %p250 = pneg %p147
        $region30: #{tpu_custom_call.1} parent=11 // pred_check_branch
          %252 = sbr.rel (%p250) target = $region32
        $region31: #{tpu_custom_call.1} parent=11 // pred_region
          _
        $region32: #{tpu_custom_call.1} parent=11 // pred_fallthru
          _
        // Predicated region
        $region33: #{tpu_custom_call.1} parent=11 // pred_check
          %p253 = pneg %p168
        $region34: #{tpu_custom_call.1} parent=11 // pred_check_branch
          %255 = sbr.rel (%p253) target = $region36
        $region35: #{tpu_custom_call.1} parent=11 // pred_region
          %s257 = ssub.s32 16, 16
          %258 = vsyncadd [#allocation6], %s257
          %s260 = sshll.u32 %s6, 4
          %s261 = int_to_ptr.vmem [resolvable:$true] %s260
          %263 = dma.vmem_to_smem %s261, 16, [#allocation5], [#allocation6]
        $region36: #{tpu_custom_call.1} parent=11 // pred_fallthru
          _
        // Predicated region
        $region37: #{tpu_custom_call.1} parent=11 // pred_check
          %p264 = pneg %p189
        $region38: #{tpu_custom_call.1} parent=11 // pred_check_branch
          %266 = sbr.rel (%p264) target = $region40
        $region39: #{tpu_custom_call.1} parent=11 // pred_region
          _
        $region40: #{tpu_custom_call.1} parent=11 // pred_fallthru
          _
      $region12: #{tpu_custom_call.1} parent=5 // pred_fallthru
        _
      %p267 = scmp.lt.s32.totalorder %s16, 2
      // Predicated region
      $region41: #{tpu_custom_call.1} parent=5 // pred_check
        %p268 = pneg %p267
      $region42: #{tpu_custom_call.1} parent=5 // pred_check_branch
        %270 = sbr.rel (%p268) target = $region44
      $region43: #{tpu_custom_call.1} parent=5 // pred_region
        // Predicated region
        $region45: #{tpu_custom_call.1} parent=43 // pred_check
          %p271 = pneg %p36
        $region46: #{tpu_custom_call.1} parent=43 // pred_check_branch
          %273 = sbr.rel (%p271) target = $region48
        $region47: #{tpu_custom_call.1} parent=43 // pred_region
          %s274 = smul.u32 2, %s16
          %p275 = scmp.lt.s32.totalorder %s274, 3
          %s276 = scalar_select %p275, %s274, 3
          %s277 = smul.addr %s276, 8
          %s278 = scalar_lea.vmem %s0, %s277
          %s279 = smul.u32 2, %s16
        $region48: #{tpu_custom_call.1} parent=43 // pred_fallthru
          _
      $region44: #{tpu_custom_call.1} parent=5 // pred_fallthru
        _
      %p280 = scmp.le.s32.totalorder 1, %s16
      %p281 = scmp.lt.s32.totalorder %s16, 3
      %p282 = pnand %p280, %p281
      %p283 = pneg %p282
      // Predicated region
      $region49: #{tpu_custom_call.1} parent=5 // pred_check
        _
      $region50: #{tpu_custom_call.1} parent=5 // pred_check_branch
        %285 = sbr.rel (%p282) target = $region52
      $region51: #{tpu_custom_call.1} parent=5 // pred_region
        %s286 = ssub.s32 %s16, 1
        // Predicated region
        $region53: #{tpu_custom_call.1} parent=51 // pred_check
          %p287 = pneg %p105
        $region54: #{tpu_custom_call.1} parent=51 // pred_check_branch
          %289 = sbr.rel (%p287) target = $region56
        $region55: #{tpu_custom_call.1} parent=51 // pred_region
          %290 = dma.done [#allocation4], 16
        $region56: #{tpu_custom_call.1} parent=51 // pred_fallthru
          _
        // Predicated region
        $region57: #{tpu_custom_call.1} parent=51 // pred_check
          %p291 = pneg %p168
        $region58: #{tpu_custom_call.1} parent=51 // pred_check_branch
          %293 = sbr.rel (%p291) target = $region60
        $region59: #{tpu_custom_call.1} parent=51 // pred_region
          %294 = dma.done [#allocation6], 16
        $region60: #{tpu_custom_call.1} parent=51 // pred_fallthru
          _
        %295 = sfence
        %s296 = smul.u32 2, %s21
        %p297 = scmp.lt.s32.totalorder %s296, 3
        %s298 = scalar_select %p297, %s296, 3
        %s299 = smul.addr %s298, 8
        %s300 = scalar_lea.vmem %s0, %s299
        %p301 = pneg %p42
        %p302 = pneg %p39
        %p303 = pneg %p63
        %p304 = pneg %p60
        %p305 = pneg %p84
        %p306 = pneg %p81
        %p307 = pneg %p105
        %p308 = pneg %p102
        %p309 = pneg %p126
        %p310 = pneg %p123
        %p311 = pneg %p147
        %p312 = pneg %p144
        %p313 = pneg %p168
        %p314 = pneg %p165
        %p315 = pneg %p189
        %p316 = pneg %p186
        %p317 = pneg %p215
        %p318 = pneg %p212
        %s319 = smul.u32 2, %s21
        %p320 = scmp.lt.s32.totalorder %s319, 3
        %s321 = scalar_select %p320, %s319, 3
        %s322 = smul.addr %s321, 8
        %s323 = scalar_lea.vmem %s8, %s322
        %s324 = smul.u32 2, %s21
        %p325 = scmp.lt.s32.totalorder %s324, 3
        %s326 = scalar_select %p325, %s324, 3
        %s327 = smul.addr %s326, 8
        %s328 = scalar_lea.vmem %s0, %s327
        %s329 = smul.u32 2, %s21
        %s330 = smul.u32 2, %s21
        %p331 = scmp.lt.s32.totalorder %s330, 3
        %s332 = scalar_select %p331, %s330, 3
        %s333 = smul.addr %s332, 8
        %s334 = scalar_lea.vmem %s8, %s333
        %s335 = smul.u32 2, %s21
        %v337 = vld [vmem:[%s1] sm:$0xf]
        %v338 = vld [vmem:[%s1 + $0x4] sm:$0xf]
        %v339 = vunpack.c.l.bf16 %v337
        %v340 = vunpack.c.l.bf16 %v338
        %v341 = vld [vmem:[%s328] sm:$0xff]
        %v342 = vld [vmem:[%s328 + $0x8] sm:$0xff]
        %v343 = vpack.c.bf16 %v342, %v341
        %v344 = vld [vmem:[%s2] sm:$0xff]
        %v345 = vld [vmem:[%s2 + $0x8] sm:$0xff]
        %v346 = vpack.c.bf16 %v345, %v344
        %vm347 = vcmask 130048
        %v349 = vsel %vm347, %v343, 0
        %351 = vmatprep.subr.bf16.mxu0 0
        %352 = vmatpush1.bf16.msra.mxu0 %v346
        %353 = vmatprep.subr.bf16.mxu0 0
        %354 = vmatpush1.bf16.msra.mxu0 0
        %355 = vmatprep.subr.bf16.mxu0 0
        %356 = vmatpush1.bf16.msra.mxu0 0
        %357 = vmatprep.subr.bf16.mxu0 0
        %358 = vmatpush1.bf16.msra.mxu0 0
        %359 = vmatprep.subr.bf16.mxu0 0
        %360 = vmatpush1.bf16.msra.mxu0 0
        %361 = vmatprep.subr.bf16.mxu0 0
        %362 = vmatpush1.bf16.msra.mxu0 0
        %363 = vmatprep.subr.bf16.mxu0 0
        %364 = vmatpush1.bf16.msra.mxu0 0
        %365 = vmatprep.subr.bf16.mxu0 0
        %366 = vmatpush1.bf16.msra.mxu0 0
        %367 = vmatprep.subr.bf16.mxu0 0
        %368 = vmatpush1.bf16.msra.mxu0 0
        %369 = vmatprep.subr.bf16.mxu0 0
        %370 = vmatpush1.bf16.msra.mxu0 0
        %371 = vmatprep.subr.bf16.mxu0 0
        %372 = vmatpush1.bf16.msra.mxu0 0
        %373 = vmatprep.subr.bf16.mxu0 0
        %374 = vmatpush1.bf16.msra.mxu0 0
        %375 = vmatprep.subr.bf16.mxu0 0
        %376 = vmatpush1.bf16.msra.mxu0 0
        %377 = vmatprep.subr.bf16.mxu0 0
        %378 = vmatpush1.bf16.msra.mxu0 0
        %379 = vmatprep.subr.bf16.mxu0 0
        %380 = vmatpush1.bf16.msra.mxu0 0
        %381 = vmatprep.subr.bf16.mxu0 0
        %382 = vmatpush1.bf16.msra.mxu0 0
        %383 = vmatprep.mubr.bf16.mxu0 0
        %384 = vmatmul.mubr.bf16.gmra.mrb[0].mxu0 %v349
        %v385 = vpop.f32.mrb[0].mxu0
        %v386 = vadd.f32 0.0, %v385
        %v387 = vpop.f32.mrb[0].mxu0
        %v388 = vpop.f32.mrb[0].mxu0
        %v389 = vadd.f32 0.0, %v388
        %v390 = vpop.f32.mrb[0].mxu0
        %391 = vdwg.mxu0
        %392 = vxpose.xlu0.b32.start [1/16] %v386, 128
        %393 = vxpose.xlu0.b32.cont [2/16] %v389, 128
        %394 = vxpose.xlu0.b32.cont [3/16] 0.0, 128
        %395 = vxpose.xlu0.b32.cont [4/16] 0.0, 128
        %396 = vxpose.xlu0.b32.cont [5/16] 0.0, 128
        %397 = vxpose.xlu0.b32.cont [6/16] 0.0, 128
        %398 = vxpose.xlu0.b32.cont [7/16] 0.0, 128
        %399 = vxpose.xlu0.b32.cont [8/16] 0.0, 128
        %400 = vxpose.xlu0.b32.cont [9/16] 0.0, 128
        %401 = vxpose.xlu0.b32.cont [10/16] 0.0, 128
        %402 = vxpose.xlu0.b32.cont [11/16] 0.0, 128
        %403 = vxpose.xlu0.b32.cont [12/16] 0.0, 128
        %404 = vxpose.xlu0.b32.cont [13/16] 0.0, 128
        %405 = vxpose.xlu0.b32.cont [14/16] 0.0, 128
        %406 = vxpose.xlu0.b32.cont [15/16] 0.0, 128
        %407 = vxpose.xlu0.b32.end [16/16] 0.0, 128
        %v408 = vpop.trf.xlu0
        %v409 = vpop.trf.xlu0
        %v410 = vpop.trf.xlu0
        %v411 = vpop.trf.xlu0
        %v412 = vpop.trf.xlu0
        %v413 = vpop.trf.xlu0
        %v414 = vpop.trf.xlu0
        %v415 = vpop.trf.xlu0
        %v416 = vpop.trf.xlu0
        %v417 = vpop.trf.xlu0
        %v418 = vpop.trf.xlu0
        %v419 = vpop.trf.xlu0
        %v420 = vpop.trf.xlu0
        %v421 = vpop.trf.xlu0
        %v422 = vpop.trf.xlu0
        %v423 = vpop.trf.xlu0
        %v424 = vld [vmem:[%s4] sm:$0x1]
        %426 = vset.pattern.permute.xlu0 0
        %427 = vperm.xlu0 %426, %v386
        %v428 = vpop.permute.xlu0 %427
        %431 = vset.pattern.permute.xlu0 0
        %432 = vperm.xlu0 %431, %v389
        %v433 = vpop.permute.xlu0 %432
        %v435 = vlaneseq
        %v436 = vshrl.u32 %v435, 7
        %v437 = vsub.s32 0, %v436
        %v438 = vrot.slane %v408, %v437
        %v439 = vadd.f32 %v428, %v438
        %v440 = vadd.f32 %v433, %v438
        %v441 = vmul.f32 %v439, 0.2
        %v442 = vmul.f32 %v440, 0.2
        %v443 = vmax.f32 %v439, %v441
        %v444 = vmax.f32 %v440, %v442
        %s445 = sld [smem:[#allocation3]]
        %v446 = vstv %s445
        %v447 = vmul.f32 %v446, %v443
        %v448 = vmul.f32 %v446, %v444
        %v449 = vadd.f32 %v447, 0.0
        %v450 = vadd.f32 %v448, 0.0
        %451 = vset.pattern.permute.xlu0 1
        %452 = vperm.xlu0 %451, %v386
        %v453 = vpop.permute.xlu0 %452
        %455 = vset.pattern.permute.xlu0 1
        %456 = vperm.xlu0 %455, %v389
        %v457 = vpop.permute.xlu0 %456
        %v459 = vlaneseq
        %v460 = vshrl.u32 %v459, 7
        %v461 = vsub.s32 1, %v460
        %v462 = vrot.slane %v408, %v461
        %v463 = vadd.f32 %v453, %v462
        %v464 = vadd.f32 %v457, %v462
        %v465 = vmul.f32 %v463, 0.2
        %v466 = vmul.f32 %v464, 0.2
        %v467 = vmax.f32 %v463, %v465
        %v468 = vmax.f32 %v464, %v466
        %s469 = sld [smem:[#allocation3 + $0x1]]
        %v470 = vstv %s469
        %v471 = vmul.f32 %v470, %v467
        %v472 = vmul.f32 %v470, %v468
        %v473 = vadd.f32 %v449, %v471
        %v474 = vadd.f32 %v450, %v472
        %475 = vset.pattern.permute.xlu0 2
        %476 = vperm.xlu0 %475, %v386
        %v477 = vpop.permute.xlu0 %476
        %479 = vset.pattern.permute.xlu0 2
        %480 = vperm.xlu0 %479, %v389
        %v481 = vpop.permute.xlu0 %480
        %v483 = vlaneseq
        %v484 = vshrl.u32 %v483, 7
        %v485 = vsub.s32 2, %v484
        %v486 = vrot.slane %v408, %v485
        %v487 = vadd.f32 %v477, %v486
        %v488 = vadd.f32 %v481, %v486
        %v489 = vmul.f32 %v487, 0.2
        %v490 = vmul.f32 %v488, 0.2
        %v491 = vmax.f32 %v487, %v489
        %v492 = vmax.f32 %v488, %v490
        %s493 = sld [smem:[#allocation3 + $0x2]]
        %v494 = vstv %s493
        %v495 = vmul.f32 %v494, %v491
        %v496 = vmul.f32 %v494, %v492
        %v497 = vadd.f32 %v473, %v495
        %v498 = vadd.f32 %v474, %v496
        %499 = vset.pattern.permute.xlu0 3
        %500 = vperm.xlu0 %499, %v386
        %v501 = vpop.permute.xlu0 %500
        %503 = vset.pattern.permute.xlu0 3
        %504 = vperm.xlu0 %503, %v389
        %v505 = vpop.permute.xlu0 %504
        %v507 = vlaneseq
        %v508 = vshrl.u32 %v507, 7
        %v509 = vsub.s32 3, %v508
        %v510 = vrot.slane %v408, %v509
        %v511 = vadd.f32 %v501, %v510
        %v512 = vadd.f32 %v505, %v510
        %v513 = vmul.f32 %v511, 0.2
        %v514 = vmul.f32 %v512, 0.2
        %v515 = vmax.f32 %v511, %v513
        %v516 = vmax.f32 %v512, %v514
        %s517 = sld [smem:[#allocation3 + $0x3]]
        %v518 = vstv %s517
        %v519 = vmul.f32 %v518, %v515
        %v520 = vmul.f32 %v518, %v516
        %v521 = vadd.f32 %v497, %v519
        %v522 = vadd.f32 %v498, %v520
        %523 = vset.pattern.permute.xlu0 4
        %524 = vperm.xlu0 %523, %v386
        %v525 = vpop.permute.xlu0 %524
        %527 = vset.pattern.permute.xlu0 4
        %528 = vperm.xlu0 %527, %v389
        %v529 = vpop.permute.xlu0 %528
        %v531 = vlaneseq
        %v532 = vshrl.u32 %v531, 7
        %v533 = vsub.s32 4, %v532
        %v534 = vrot.slane %v408, %v533
        %v535 = vadd.f32 %v525, %v534
        %v536 = vadd.f32 %v529, %v534
        %v537 = vmul.f32 %v535, 0.2
        %v538 = vmul.f32 %v536, 0.2
        %v539 = vmax.f32 %v535, %v537
        %v540 = vmax.f32 %v536, %v538
        %s541 = sld [smem:[#allocation3 + $0x4]]
        %v542 = vstv %s541
        %v543 = vmul.f32 %v542, %v539
        %v544 = vmul.f32 %v542, %v540
        %v545 = vadd.f32 %v521, %v543
        %v546 = vadd.f32 %v522, %v544
        %547 = vset.pattern.permute.xlu0 5
        %548 = vperm.xlu0 %547, %v386
        %v549 = vpop.permute.xlu0 %548
        %551 = vset.pattern.permute.xlu0 5
        %552 = vperm.xlu0 %551, %v389
        %v553 = vpop.permute.xlu0 %552
        %v555 = vlaneseq
        %v556 = vshrl.u32 %v555, 7
        %v557 = vsub.s32 5, %v556
        %v558 = vrot.slane %v408, %v557
        %v559 = vadd.f32 %v549, %v558
        %v560 = vadd.f32 %v553, %v558
        %v561 = vmul.f32 %v559, 0.2
        %v562 = vmul.f32 %v560, 0.2
        %v563 = vmax.f32 %v559, %v561
        %v564 = vmax.f32 %v560, %v562
        %s565 = sld [smem:[#allocation3 + $0x5]]
        %v566 = vstv %s565
        %v567 = vmul.f32 %v566, %v563
        %v568 = vmul.f32 %v566, %v564
        %v569 = vadd.f32 %v545, %v567
        %v570 = vadd.f32 %v546, %v568
        %571 = vset.pattern.permute.xlu0 6
        %572 = vperm.xlu0 %571, %v386
        %v573 = vpop.permute.xlu0 %572
        %575 = vset.pattern.permute.xlu0 6
        %576 = vperm.xlu0 %575, %v389
        %v577 = vpop.permute.xlu0 %576
        %v579 = vlaneseq
        %v580 = vshrl.u32 %v579, 7
        %v581 = vsub.s32 6, %v580
        %v582 = vrot.slane %v408, %v581
        %v583 = vadd.f32 %v573, %v582
        %v584 = vadd.f32 %v577, %v582
        %v585 = vmul.f32 %v583, 0.2
        %v586 = vmul.f32 %v584, 0.2
        %v587 = vmax.f32 %v583, %v585
        %v588 = vmax.f32 %v584, %v586
        %s589 = sld [smem:[#allocation3 + $0x6]]
        %v590 = vstv %s589
        %v591 = vmul.f32 %v590, %v587
        %v592 = vmul.f32 %v590, %v588
        %v593 = vadd.f32 %v569, %v591
        %v594 = vadd.f32 %v570, %v592
        %595 = vset.pattern.permute.xlu0 7
        %596 = vperm.xlu0 %595, %v386
        %v597 = vpop.permute.xlu0 %596
        %599 = vset.pattern.permute.xlu0 7
        %600 = vperm.xlu0 %599, %v389
        %v601 = vpop.permute.xlu0 %600
        %v603 = vlaneseq
        %v604 = vshrl.u32 %v603, 7
        %v605 = vsub.s32 7, %v604
        %v606 = vrot.slane %v408, %v605
        %v607 = vadd.f32 %v597, %v606
        %v608 = vadd.f32 %v601, %v606
        %v609 = vmul.f32 %v607, 0.2
        %v610 = vmul.f32 %v608, 0.2
        %v611 = vmax.f32 %v607, %v609
        %v612 = vmax.f32 %v608, %v610
        %s613 = sld [smem:[#allocation3 + $0x7]]
        %v614 = vstv %s613
        %v615 = vmul.f32 %v614, %v611
        %v616 = vmul.f32 %v614, %v612
        %v617 = vadd.f32 %v593, %v615
        %v618 = vadd.f32 %v594, %v616
        %v619 = vsel %vm347, %v617, -inf
        %620 = vmax.xlane.f32.xlu0 %v619
        %v621 = vpop.xlane.xlu0 %620
        %v622 = vsel %vm347, %v618, -inf
        %623 = vmax.xlane.f32.xlu0 %v622
        %v624 = vpop.xlane.xlu0 %623
        %v625 = vsub.f32 %v617, %v621
        %v626 = vsub.f32 %v618, %v624
        %v627 = vmul.f32 %v625, 1.442695
        %v628 = vpow.pop %v627
        %v629 = vmul.f32 %v626, 1.442695
        %v630 = vpow.pop %v629
        %v631 = vmul.f32 %v628, %v339
        %v632 = vmul.f32 %v630, %v340
        %v633 = vsel %vm347, %v631, 0.0
        %634 = vadd.xlane.f32.xlu0 %v633
        %v635 = vpop.xlane.xlu0 %634
        %v636 = vsel %vm347, %v632, 0.0
        %637 = vadd.xlane.f32.xlu0 %v636
        %v638 = vpop.xlane.xlu0 %637
        %vm639 = vcmp.le.f32.partialorder %v635, 0.0
        %vm640 = vcmp.le.f32.partialorder %v638, 0.0
        %v641 = vsel %vm639, 1, 0
        %v642 = vsel %vm640, 1, 0
        %v643 = vcvt.s32.f32 %v641
        %v644 = vcvt.s32.f32 %v642
        %v645 = vadd.f32 %v635, %v643
        %v646 = vadd.f32 %v638, %v644
        %v647 = vpack.c.bf16 %v632, %v631
        %v648 = vpack.c.bf16 %v389, %v386
        %v650 = vsel %vm347, %v647, 0
        %652 = vmatprep.subr.bf16.mxu0 0
        %653 = vmatpush1.bf16.msra.mxu0 %v648
        %654 = vmatprep.subr.bf16.mxu0 0
        %655 = vmatpush1.bf16.msra.mxu0 0
        %656 = vmatprep.subr.bf16.mxu0 0
        %657 = vmatpush1.bf16.msra.mxu0 0
        %658 = vmatprep.subr.bf16.mxu0 0
        %659 = vmatpush1.bf16.msra.mxu0 0
        %660 = vmatprep.subr.bf16.mxu0 0
        %661 = vmatpush1.bf16.msra.mxu0 0
        %662 = vmatprep.subr.bf16.mxu0 0
        %663 = vmatpush1.bf16.msra.mxu0 0
        %664 = vmatprep.subr.bf16.mxu0 0
        %665 = vmatpush1.bf16.msra.mxu0 0
        %666 = vmatprep.subr.bf16.mxu0 0
        %667 = vmatpush1.bf16.msra.mxu0 0
        %668 = vmatprep.subr.bf16.mxu0 0
        %669 = vmatpush1.bf16.msra.mxu0 0
        %670 = vmatprep.subr.bf16.mxu0 0
        %671 = vmatpush1.bf16.msra.mxu0 0
        %672 = vmatprep.subr.bf16.mxu0 0
        %673 = vmatpush1.bf16.msra.mxu0 0
        %674 = vmatprep.subr.bf16.mxu0 0
        %675 = vmatpush1.bf16.msra.mxu0 0
        %676 = vmatprep.subr.bf16.mxu0 0
        %677 = vmatpush1.bf16.msra.mxu0 0
        %678 = vmatprep.subr.bf16.mxu0 0
        %679 = vmatpush1.bf16.msra.mxu0 0
        %680 = vmatprep.subr.bf16.mxu0 0
        %681 = vmatpush1.bf16.msra.mxu0 0
        %682 = vmatprep.subr.bf16.mxu0 0
        %683 = vmatpush1.bf16.msra.mxu0 0
        %684 = vmatprep.mubr.bf16.mxu0 0
        %685 = vmatmul.mubr.bf16.gmra.mrb[0].mxu0 %v650
        %v686 = vpop.f32.mrb[0].mxu0
        %v687 = vadd.f32 0.0, %v686
        %v688 = vpop.f32.mrb[0].mxu0
        %v689 = vpop.f32.mrb[0].mxu0
        %v690 = vadd.f32 0.0, %v689
        %v691 = vpop.f32.mrb[0].mxu0
        %692 = vdwg.mxu0
        %v693 = vrcp.pop %v645
        %v694 = vrcp.pop %v646
        %v695 = vmul.f32 %v687, %v693
        %v696 = vmul.f32 %v690, %v694
        %v698 = vlaneseq
        %v699 = vshrl.u32 %v698, 7
        %v700 = vsub.s32 0, %v699
        %v701 = vrot.slane %v424, %v700
        %v703 = vadd.f32 %v695, %v701
        %v704 = vadd.f32 %v696, %v701
        %v705 = vmax.f32 %v703, 0.0
        %v706 = vmax.f32 %v704, 0.0
        %vm707 = vcmask 64512
        %708 = vst.msk [vmem:[#allocation2] sm:$0xff] %vm707, %v705
        %709 = vst.msk [vmem:[#allocation2 + $0x8] sm:$0xff] %vm707, %v706
        %v710 = vld [vmem:[#allocation2] sm:$0xff]
        %v711 = vld [vmem:[#allocation2 + $0x8] sm:$0xff]
        %v712 = vpack.c.bf16 %v711, %v710
        %v713 = vld [vmem:[%s5] sm:$0xff]
        %v714 = vpack.c.bf16 %v713, %v713
        %v716 = vsel %vm707, %v712, 0
        %vm718 = vcmask 1043456
        %v720 = vsel %vm718, %v714, 0
        %722 = vmatprep.subr.bf16.mxu0 0
        %723 = vmatpush1.bf16.msra.mxu0 %v720
        %724 = vmatprep.subr.bf16.mxu0 0
        %725 = vmatpush1.bf16.msra.mxu0 0
        %726 = vmatprep.subr.bf16.mxu0 0
        %727 = vmatpush1.bf16.msra.mxu0 0
        %728 = vmatprep.subr.bf16.mxu0 0
        %729 = vmatpush1.bf16.msra.mxu0 0
        %730 = vmatprep.subr.bf16.mxu0 0
        %731 = vmatpush1.bf16.msra.mxu0 0
        %732 = vmatprep.subr.bf16.mxu0 0
        %733 = vmatpush1.bf16.msra.mxu0 0
        %734 = vmatprep.subr.bf16.mxu0 0
        %735 = vmatpush1.bf16.msra.mxu0 0
        %736 = vmatprep.subr.bf16.mxu0 0
        %737 = vmatpush1.bf16.msra.mxu0 0
        %738 = vmatprep.subr.bf16.mxu0 0
        %739 = vmatpush1.bf16.msra.mxu0 0
        %740 = vmatprep.subr.bf16.mxu0 0
        %741 = vmatpush1.bf16.msra.mxu0 0
        %742 = vmatprep.subr.bf16.mxu0 0
        %743 = vmatpush1.bf16.msra.mxu0 0
        %744 = vmatprep.subr.bf16.mxu0 0
        %745 = vmatpush1.bf16.msra.mxu0 0
        %746 = vmatprep.subr.bf16.mxu0 0
        %747 = vmatpush1.bf16.msra.mxu0 0
        %748 = vmatprep.subr.bf16.mxu0 0
        %749 = vmatpush1.bf16.msra.mxu0 0
        %750 = vmatprep.subr.bf16.mxu0 0
        %751 = vmatpush1.bf16.msra.mxu0 0
        %752 = vmatprep.subr.bf16.mxu0 0
        %753 = vmatpush1.bf16.msra.mxu0 0
        %754 = vmatprep.mubr.bf16.mxu0 0
        %755 = vmatmul.mubr.bf16.gmra.mrb[0].mxu0 %v716
        %v756 = vpop.f32.mrb[0].mxu0
        %v757 = vadd.f32 0.0, %v756
        %v758 = vpop.f32.mrb[0].mxu0
        %v759 = vpop.f32.mrb[0].mxu0
        %v760 = vadd.f32 0.0, %v759
        %v761 = vpop.f32.mrb[0].mxu0
        %762 = vdwg.mxu0
        %763 = vxpose.xlu0.b32.start [1/16] %v757, 128
        %764 = vxpose.xlu0.b32.cont [2/16] %v760, 128
        %765 = vxpose.xlu0.b32.cont [3/16] 0.0, 128
        %766 = vxpose.xlu0.b32.cont [4/16] 0.0, 128
        %767 = vxpose.xlu0.b32.cont [5/16] 0.0, 128
        %768 = vxpose.xlu0.b32.cont [6/16] 0.0, 128
        %769 = vxpose.xlu0.b32.cont [7/16] 0.0, 128
        %770 = vxpose.xlu0.b32.cont [8/16] 0.0, 128
        %771 = vxpose.xlu0.b32.cont [9/16] 0.0, 128
        %772 = vxpose.xlu0.b32.cont [10/16] 0.0, 128
        %773 = vxpose.xlu0.b32.cont [11/16] 0.0, 128
        %774 = vxpose.xlu0.b32.cont [12/16] 0.0, 128
        %775 = vxpose.xlu0.b32.cont [13/16] 0.0, 128
        %776 = vxpose.xlu0.b32.cont [14/16] 0.0, 128
        %777 = vxpose.xlu0.b32.cont [15/16] 0.0, 128
        %778 = vxpose.xlu0.b32.end [16/16] 0.0, 128
        %v779 = vpop.trf.xlu0
        %v780 = vpop.trf.xlu0
        %v781 = vpop.trf.xlu0
        %v782 = vpop.trf.xlu0
        %v783 = vpop.trf.xlu0
        %v784 = vpop.trf.xlu0
        %v785 = vpop.trf.xlu0
        %v786 = vpop.trf.xlu0
        %v787 = vpop.trf.xlu0
        %v788 = vpop.trf.xlu0
        %v789 = vpop.trf.xlu0
        %v790 = vpop.trf.xlu0
        %v791 = vpop.trf.xlu0
        %v792 = vpop.trf.xlu0
        %v793 = vpop.trf.xlu0
        %v794 = vpop.trf.xlu0
        %v795 = vld [vmem:[%s7] sm:$0x1]
        %797 = vset.pattern.permute.xlu0 0
        %798 = vperm.xlu0 %797, %v757
        %v799 = vpop.permute.xlu0 %798
        %802 = vset.pattern.permute.xlu0 0
        %803 = vperm.xlu0 %802, %v760
        %v804 = vpop.permute.xlu0 %803
        %v806 = vlaneseq
        %v807 = vshrl.u32 %v806, 7
        %v808 = vsub.s32 0, %v807
        %v809 = vrot.slane %v779, %v808
        %v810 = vadd.f32 %v799, %v809
        %v811 = vadd.f32 %v804, %v809
        %v812 = vmul.f32 %v810, 0.2
        %v813 = vmul.f32 %v811, 0.2
        %v814 = vmax.f32 %v810, %v812
        %v815 = vmax.f32 %v811, %v813
        %s816 = sld [smem:[#allocation5]]
        %v817 = vstv %s816
        %v818 = vmul.f32 %v817, %v814
        %v819 = vmul.f32 %v817, %v815
        %v820 = vadd.f32 %v818, 0.0
        %v821 = vadd.f32 %v819, 0.0
        %822 = vset.pattern.permute.xlu0 1
        %823 = vperm.xlu0 %822, %v757
        %v824 = vpop.permute.xlu0 %823
        %826 = vset.pattern.permute.xlu0 1
        %827 = vperm.xlu0 %826, %v760
        %v828 = vpop.permute.xlu0 %827
        %v830 = vlaneseq
        %v831 = vshrl.u32 %v830, 7
        %v832 = vsub.s32 1, %v831
        %v833 = vrot.slane %v779, %v832
        %v834 = vadd.f32 %v824, %v833
        %v835 = vadd.f32 %v828, %v833
        %v836 = vmul.f32 %v834, 0.2
        %v837 = vmul.f32 %v835, 0.2
        %v838 = vmax.f32 %v834, %v836
        %v839 = vmax.f32 %v835, %v837
        %s840 = sld [smem:[#allocation5 + $0x1]]
        %v841 = vstv %s840
        %v842 = vmul.f32 %v841, %v838
        %v843 = vmul.f32 %v841, %v839
        %v844 = vadd.f32 %v820, %v842
        %v845 = vadd.f32 %v821, %v843
        %846 = vset.pattern.permute.xlu0 2
        %847 = vperm.xlu0 %846, %v757
        %v848 = vpop.permute.xlu0 %847
        %850 = vset.pattern.permute.xlu0 2
        %851 = vperm.xlu0 %850, %v760
        %v852 = vpop.permute.xlu0 %851
        %v854 = vlaneseq
        %v855 = vshrl.u32 %v854, 7
        %v856 = vsub.s32 2, %v855
        %v857 = vrot.slane %v779, %v856
        %v858 = vadd.f32 %v848, %v857
        %v859 = vadd.f32 %v852, %v857
        %v860 = vmul.f32 %v858, 0.2
        %v861 = vmul.f32 %v859, 0.2
        %v862 = vmax.f32 %v858, %v860
        %v863 = vmax.f32 %v859, %v861
        %s864 = sld [smem:[#allocation5 + $0x2]]
        %v865 = vstv %s864
        %v866 = vmul.f32 %v865, %v862
        %v867 = vmul.f32 %v865, %v863
        %v868 = vadd.f32 %v844, %v866
        %v869 = vadd.f32 %v845, %v867
        %870 = vset.pattern.permute.xlu0 3
        %871 = vperm.xlu0 %870, %v757
        %v872 = vpop.permute.xlu0 %871
        %874 = vset.pattern.permute.xlu0 3
        %875 = vperm.xlu0 %874, %v760
        %v876 = vpop.permute.xlu0 %875
        %v878 = vlaneseq
        %v879 = vshrl.u32 %v878, 7
        %v880 = vsub.s32 3, %v879
        %v881 = vrot.slane %v779, %v880
        %v882 = vadd.f32 %v872, %v881
        %v883 = vadd.f32 %v876, %v881
        %v884 = vmul.f32 %v882, 0.2
        %v885 = vmul.f32 %v883, 0.2
        %v886 = vmax.f32 %v882, %v884
        %v887 = vmax.f32 %v883, %v885
        %s888 = sld [smem:[#allocation5 + $0x3]]
        %v889 = vstv %s888
        %v890 = vmul.f32 %v889, %v886
        %v891 = vmul.f32 %v889, %v887
        %v892 = vadd.f32 %v868, %v890
        %v893 = vadd.f32 %v869, %v891
        %v894 = vsel %vm347, %v892, -inf
        %895 = vmax.xlane.f32.xlu0 %v894
        %v896 = vpop.xlane.xlu0 %895
        %v897 = vsel %vm347, %v893, -inf
        %898 = vmax.xlane.f32.xlu0 %v897
        %v899 = vpop.xlane.xlu0 %898
        %v900 = vsub.f32 %v892, %v896
        %v901 = vsub.f32 %v893, %v899
        %v902 = vmul.f32 %v900, 1.442695
        %v903 = vpow.pop %v902
        %v904 = vmul.f32 %v901, 1.442695
        %v905 = vpow.pop %v904
        %v906 = vmul.f32 %v903, %v339
        %v907 = vmul.f32 %v905, %v340
        %v908 = vsel %vm347, %v906, 0.0
        %909 = vadd.xlane.f32.xlu0 %v908
        %v910 = vpop.xlane.xlu0 %909
        %v911 = vsel %vm347, %v907, 0.0
        %912 = vadd.xlane.f32.xlu0 %v911
        %v913 = vpop.xlane.xlu0 %912
        %vm914 = vcmp.le.f32.partialorder %v910, 0.0
        %vm915 = vcmp.le.f32.partialorder %v913, 0.0
        %v916 = vsel %vm914, 1, 0
        %v917 = vsel %vm915, 1, 0
        %v918 = vcvt.s32.f32 %v916
        %v919 = vcvt.s32.f32 %v917
        %v920 = vadd.f32 %v910, %v918
        %v921 = vadd.f32 %v913, %v919
        %v922 = vpack.c.bf16 %v907, %v906
        %v923 = vpack.c.bf16 %v760, %v757
        %v925 = vsel %vm347, %v922, 0
        %927 = vmatprep.subr.bf16.mxu0 0
        %928 = vmatpush1.bf16.msra.mxu0 %v923
        %929 = vmatprep.subr.bf16.mxu0 0
        %930 = vmatpush1.bf16.msra.mxu0 0
        %931 = vmatprep.subr.bf16.mxu0 0
        %932 = vmatpush1.bf16.msra.mxu0 0
        %933 = vmatprep.subr.bf16.mxu0 0
        %934 = vmatpush1.bf16.msra.mxu0 0
        %935 = vmatprep.subr.bf16.mxu0 0
        %936 = vmatpush1.bf16.msra.mxu0 0
        %937 = vmatprep.subr.bf16.mxu0 0
        %938 = vmatpush1.bf16.msra.mxu0 0
        %939 = vmatprep.subr.bf16.mxu0 0
        %940 = vmatpush1.bf16.msra.mxu0 0
        %941 = vmatprep.subr.bf16.mxu0 0
        %942 = vmatpush1.bf16.msra.mxu0 0
        %943 = vmatprep.subr.bf16.mxu0 0
        %944 = vmatpush1.bf16.msra.mxu0 0
        %945 = vmatprep.subr.bf16.mxu0 0
        %946 = vmatpush1.bf16.msra.mxu0 0
        %947 = vmatprep.subr.bf16.mxu0 0
        %948 = vmatpush1.bf16.msra.mxu0 0
        %949 = vmatprep.subr.bf16.mxu0 0
        %950 = vmatpush1.bf16.msra.mxu0 0
        %951 = vmatprep.subr.bf16.mxu0 0
        %952 = vmatpush1.bf16.msra.mxu0 0
        %953 = vmatprep.subr.bf16.mxu0 0
        %954 = vmatpush1.bf16.msra.mxu0 0
        %955 = vmatprep.subr.bf16.mxu0 0
        %956 = vmatpush1.bf16.msra.mxu0 0
        %957 = vmatprep.subr.bf16.mxu0 0
        %958 = vmatpush1.bf16.msra.mxu0 0
        %959 = vmatprep.mubr.bf16.mxu0 0
        %960 = vmatmul.mubr.bf16.gmra.mrb[0].mxu0 %v925
        %v961 = vpop.f32.mrb[0].mxu0
        %v962 = vadd.f32 0.0, %v961
        %v963 = vpop.f32.mrb[0].mxu0
        %v964 = vpop.f32.mrb[0].mxu0
        %v965 = vadd.f32 0.0, %v964
        %v966 = vpop.f32.mrb[0].mxu0
        %967 = vdwg.mxu0
        %v968 = vrcp.pop %v920
        %v969 = vrcp.pop %v921
        %v970 = vmul.f32 %v962, %v968
        %v971 = vmul.f32 %v965, %v969
        %v973 = vlaneseq
        %v974 = vshrl.u32 %v973, 7
        %v975 = vsub.s32 0, %v974
        %v976 = vrot.slane %v795, %v975
        %v978 = vadd.f32 %v970, %v976
        %v979 = vadd.f32 %v971, %v976
        %vm980 = vcmask 31744
        %981 = vst.msk [vmem:[%s334] sm:$0xff] %vm980, %v978
        %982 = vst.msk [vmem:[%s334 + $0x8] sm:$0xff] %vm980, %v979
        %s983 = smul.u32 2, %s21
        %p984 = scmp.lt.s32.totalorder %s983, 3
        %s985 = scalar_select %p984, %s983, 3
        %s986 = smul.addr %s985, 8
        %s987 = scalar_lea.vmem %s8, %s986
        // Predicated region
        $region61: #{tpu_custom_call.1} parent=51 // pred_check
          %p988 = pneg %p212
        $region62: #{tpu_custom_call.1} parent=51 // pred_check_branch
          %990 = sbr.rel (%p988) target = $region64
        $region63: #{tpu_custom_call.1} parent=51 // pred_region
          %s991 = smul.u32 2, %s21
        $region64: #{tpu_custom_call.1} parent=51 // pred_fallthru
          _
      $region52: #{tpu_custom_call.1} parent=5 // pred_fallthru
        _
      %p992 = scmp.le.s32.totalorder 2, %s16
      // Predicated region
      $region65: #{tpu_custom_call.1} parent=5 // pred_check
        %p993 = pneg %p992
      $region66: #{tpu_custom_call.1} parent=5 // pred_check_branch
        %995 = sbr.rel (%p993) target = $region68
      $region67: #{tpu_custom_call.1} parent=5 // pred_region
        %s996 = ssub.s32 %s16, 2
        // Predicated region
        $region69: #{tpu_custom_call.1} parent=67 // pred_check
          %p997 = pneg %p218
        $region70: #{tpu_custom_call.1} parent=67 // pred_check_branch
          %999 = sbr.rel (%p997) target = $region72
        $region71: #{tpu_custom_call.1} parent=67 // pred_region
          %s1000 = smul.u32 2, %s22
          %p1001 = scmp.lt.s32.totalorder %s1000, 3
          %s1002 = scalar_select %p1001, %s1000, 3
          %s1003 = smul.addr %s1002, 8
          %s1004 = scalar_lea.vmem %s8, %s1003
        $region72: #{tpu_custom_call.1} parent=67 // pred_fallthru
          _
      $region68: #{tpu_custom_call.1} parent=5 // pred_fallthru
        _
    $region6: #{tpu_custom_call.1} parent=1 // loop_footer
      %s20 = sadd.s32 1, %s16
    $region7: #{tpu_custom_call.1} parent=1 // loop_footer_branch
      %15 = sbr.rel target = $region3
    $region8: #{tpu_custom_call.1} parent=1 // loop_exit
      _
    %1005 = vsyncpa [#allocation4], 1
    %s1006 = scalar_lea.sflag [#allocation4], 1
    %1007 = vsyncpa %s1006, 1
    %1008 = vsyncpa [#allocation6], 1

</llo_original>
